<compile_context>
chip_gen: v7x
topology: tpu7x:2x2x1
jax: 0.10.0
libtpu: 0.0.40
codegen_flags: <defaults>
</compile_context>

<pallas_src>
import jax
import jax.numpy as jnp
from jax.experimental import pallas as pl
from jax.experimental.pallas import tpu as pltpu


def _add_one_kernel(x_ref, o_ref):
    # Elementwise hot path: whole VMEM tile at once (one VPU add per vreg).
    o_ref[...] = x_ref[...] + jnp.asarray(1, dtype=o_ref.dtype)


_LANE = 128
_MAX_COLS = 2048                     # widest lane-dense slab we search for
_SINGLE_BLOCK_MAX_BYTES = 256 * 1024  # below this: one block, no grid win
_VMEM_HEADROOM = 16 << 20            # compiler scratch / pipeline slack


def _sublane_multiple(dtype) -> int:
    # Sublane granularity per dtype width (packed dtypes stack sublanes).
    return {4: 8, 2: 16, 1: 32}.get(jnp.dtype(dtype).itemsize, 8)


def _target_block_bytes() -> int:
    """Generation-aware per-buffer block-byte target."""
    kind = ""
    try:
        kind = jax.devices()[0].device_kind.lower()
    except Exception:
        pass
    if "v7" in kind:
        return 8 << 20   # ~3.2 TB/s HBM: big blocks to amortize per-step overhead
    if "v6" in kind:
        return 4 << 20   # measured 85-86% roofline plateau; 4 bufs = 16 MiB
    if "v5" in kind:
        return 2 << 20   # ~0.8 TB/s: 2 MiB step ~5 us, overhead already amortized
    return 4 << 20       # unknown part: safe middle ground


def _add_one_2d(x2d: jax.Array, *, donate: bool) -> jax.Array:
    """x2d + 1 for a lane-dense (rows, cols) slab. No padding ever."""
    rows, cols = x2d.shape
    dtype = x2d.dtype
    itemsize = jnp.dtype(dtype).itemsize
    sub = _sublane_multiple(dtype)
    n_bytes = rows * cols * itemsize

    if n_bytes <= _SINGLE_BLOCK_MAX_BYTES or rows <= sub:
        # Tiny input: one full-array block (always a legal block shape).
        tr = rows
    else:
        target = _target_block_bytes()
        tr = max(sub, (target // (cols * itemsize)) // sub * sub)
        # Guarantee >=2 grid steps so a 2-TC chip (v7x) can shard the
        # "parallel" grid axis across both TensorCores; the possibly-ragged
        # last block is masked by Pallas, so no padding is needed.
        half = max(sub, (pl.cdiv(rows, 2) // sub) * sub)
        tr = min(tr, half, rows)

    grid = (pl.cdiv(rows, tr),)
    block_bytes = tr * cols * itemsize
    # Double-buffered in + out (= 4 block buffers) plus headroom, kept under
    # 48 MiB so it fits v7x's 64 MiB physical VMEM with margin.
    vmem_limit = min(48 << 20, max(32 << 20, 4 * block_bytes + _VMEM_HEADROOM))

    return pl.pallas_call(
        _add_one_kernel,
        out_shape=jax.ShapeDtypeStruct((rows, cols), dtype),
        grid_spec=pltpu.PrefetchScalarGridSpec(
            num_scalar_prefetch=0,
            grid=grid,
            in_specs=[pl.BlockSpec((tr, cols), lambda i: (i, 0))],
            out_specs=pl.BlockSpec((tr, cols), lambda i: (i, 0)),
        ),
        compiler_params=pltpu.CompilerParams(
            dimension_semantics=("parallel",),
            vmem_limit_bytes=vmem_limit,
        ),
        # Only alias when the input buffer is actually dead/donated; otherwise
        # XLA would insert a defensive full copy (extra HBM pass).
        input_output_aliases=({0: 0} if donate else {}),
        cost_estimate=pl.CostEstimate(
            flops=rows * cols,
            transcendentals=0,
            bytes_accessed=2 * rows * cols * itemsize,
        ),
    )(x2d)


def add_one(x: jax.Array, *, donate: bool = False) -> jax.Array:
    """Compute x + 1 with a Pallas TPU kernel; works for arbitrary shapes.

    Set donate=True only if the caller no longer needs x (lets XLA reuse the
    input HBM allocation for the output).
    """
    # TODO(synk): bool / sub-byte dtypes keep JAX same-dtype add semantics,
    # which can differ from PyTorch's promoting `x + 1`.
    orig_shape = x.shape
    dtype = x.dtype
    n = x.size
    if n == 0:
        return x

    flat = jnp.reshape(x, (-1,))

    if n % _LANE == 0:
        # Fast path: lane-dense 2-D slab, zero padding, zero extra HBM passes.
        cols = _LANE
        for k in range(_MAX_COLS // _LANE, 0, -1):
            c = _LANE * k
            if n % c == 0:
                cols = c
                break
        out2d = _add_one_2d(flat.reshape(n // cols, cols), donate=donate)
        return out2d.reshape(orig_shape)

    bulk = (n // _LANE) * _LANE
    one = jnp.asarray(1, dtype=dtype)
    if bulk == 0:
        # Whole array is smaller than one lane row: single full-shape block.
        out2d = _add_one_2d(flat.reshape(1, n), donate=donate)
        return out2d.reshape(orig_shape)

    # Ragged tail: Pallas kernel on the lane-aligned bulk, one tiny VPU add on
    # the <128-element remainder (no pad + no trailing slice of the big slab).
    head = _add_one_2d(flat[:bulk].reshape(bulk // _LANE, _LANE), donate=True)
    tail = flat[bulk:] + one
    return jnp.concatenate([head.reshape(-1), tail]).reshape(orig_shape)


if __name__ == "__main__":
    key = jax.random.PRNGKey(0)

    # Primary demo input consistent with the module's generic usage: (2,4,16,16).
    x = jax.random.normal(key, (2, 4, 16, 16), dtype=jnp.float32)
    y = jax.block_until_ready(add_one(x))
    assert y.shape == x.shape and y.dtype == x.dtype
    assert jnp.array_equal(y, x + 1.0), "mismatch vs reference (small input)"

    # Multi-grid-step path (>=2 blocks, megacore-shardable grid).
    x2 = jax.random.normal(jax.random.PRNGKey(1), (512, 2048), dtype=jnp.float32)
    y2 = jax.block_until_ready(add_one(x2))
    assert jnp.array_equal(y2, x2 + 1.0), "mismatch vs reference (tiled input)"

    # Ragged path: element count not a multiple of 128 (bulk kernel + tiny tail).
    x3 = jax.random.normal(jax.random.PRNGKey(2), (7, 61), dtype=jnp.float32)
    y3 = jax.block_until_ready(add_one(x3))
    assert jnp.array_equal(y3, x3 + 1.0), "mismatch vs reference (ragged input)"

    print("KERNEL_OK")
</pallas_src>

<mosaic_0001>
module attributes {stable_mosaic.version = 11 : i64} {
  func.func @_add_one_kernel(%arg0: i32, %arg1: memref<1x2048xf32, #tpu.memory_space<vmem>>, %arg2: memref<1x2048xf32, #tpu.memory_space<vmem>>) attributes {dimension_semantics = [#tpu.dimension_semantics<parallel>], iteration_bounds = array<i64: 1>, scalar_prefetch = 0 : i64, scratch_operands = 0 : i64, tpu.core_type = #tpu.core_type<tc>, window_params = [{transform_indices = @transform_0, window_bounds = array<i64: 1, 2048>}, {transform_indices = @transform_1, window_bounds = array<i64: 1, 2048>}]} {
    %c0 = arith.constant 0 : index
    %c0_0 = arith.constant 0 : index
    %0 = vector.load %arg1[%c0, %c0_0] : memref<1x2048xf32, #tpu.memory_space<vmem>>, vector<1x2048xf32>
    %cst = arith.constant 1.000000e+00 : f32
    %1 = vector.broadcast %cst : f32 to vector<1x2048xf32>
    %2 = arith.addf %0, %1 : vector<1x2048xf32>
    %c0_1 = arith.constant 0 : index
    %c0_2 = arith.constant 0 : index
    %3 = vector.load %arg2[%c0_1, %c0_2] : memref<1x2048xf32, #tpu.memory_space<vmem>>, vector<1x2048xf32>
    tpu.vector_store %arg2[%c0_1, %c0_2], %2 {strides = array<i32>} : memref<1x2048xf32, #tpu.memory_space<vmem>>, vector<1x2048xf32>,
    return
  }
  func.func @transform_0(%arg0: i32) -> (i32, i32) {
    %c0_i32 = arith.constant 0 : i32
    %c0_i32_0 = arith.constant 0 : i32
    return %arg0, %c0_i32 : i32, i32
  }
  func.func @transform_1(%arg0: i32) -> (i32, i32) {
    %c0_i32 = arith.constant 0 : i32
    %c0_i32_0 = arith.constant 0 : i32
    return %arg0, %c0_i32 : i32, i32
  }
}

</mosaic_0001>

<llo_original>
// kernel: tpu_custom_call.1
$region0: #{tpu_custom_call.1}
  #allocation0 [shape = 'u32[]', space=smem, size = 0x4, offset = 0x4, fixed_abs, tag = 'smem constant byte address 0x4 - core index']
  #allocation1 [shape = 'u32[144,128]{1,0:T(1,128)}', space=vmem, size = 0x12000, scoped, tag = 'internal scratch']
  %s0 = inlined_call_operand.hbm [shape: f32[1,2048], index: 0, kind: input, shape index: {}]
  %s1 = inlined_call_operand.hbm [shape: f32[1,2048], index: 1, kind: output, shape index: {}]
  %s2 = sld [smem:[#allocation0]]
  $region18: #{tpu_custom_call.1} parent=0
    _
  %s4 = ssub.s32 1, %s2
  %s5 = scalar_select 0, %s4, %s2
  $region1: #{tpu_custom_call.1} parent=0
    #allocation2 [shape = 'u8[8192]{0}', space=vmem, size = 0x2000, scoped, tag = 'input window, operand 0, single buffered']
    #allocation3 [shape = 's32[1]{0}', space=sflag, size = 0x4, scoped, tag = 'scoped memory for tpu_custom_call.1']
    #allocation4 [shape = 's32[1]{0}', space=sflag, size = 0x4, scoped, tag = 'scoped memory for tpu_custom_call.1']
    #allocation5 [shape = 'u8[8192]{0}', space=vmem, size = 0x2000, scoped, tag = 'output window, operand 0, single buffered']
    %6 = vsyncpa [#allocation3], 0
    %7 = vsyncpa [#allocation4], 0
    // Predicated region
    $region2: #{tpu_custom_call.1} parent=1 // pred_check
      _
    $region3: #{tpu_custom_call.1} parent=1 // pred_check_branch
      %9 = sbr.rel (0) target = $region5
    $region4: #{tpu_custom_call.1} parent=1 // pred_region
      %s11 = ssub.s32 256, 256
      %12 = vsyncadd [#allocation3], %s11
      %s14 = sshll.u32 [#allocation2], 4
      %s15 = int_to_ptr.vmem [resolvable:$true] %s14
      %17 = dma.hbm_to_vmem [thread:$0]  %s0, 256, %s15, [#allocation3]
    $region5: #{tpu_custom_call.1} parent=1 // pred_fallthru
      _
    // Predicated region
    $region6: #{tpu_custom_call.1} parent=1 // pred_check
      _
    $region7: #{tpu_custom_call.1} parent=1 // pred_check_branch
      %19 = sbr.rel (0) target = $region9
    $region8: #{tpu_custom_call.1} parent=1 // pred_region
      %20 = dma.done [#allocation3], 256
    $region9: #{tpu_custom_call.1} parent=1 // pred_fallthru
      _
    %v21 = vld [vmem:[#allocation2] sm:$0xff]
    %v22 = vld [vmem:[#allocation2 + $0x8] sm:$0xff]
    %v23 = vadd.f32 %v21, 1.0
    %v24 = vadd.f32 %v22, 1.0
    %25 = vst [vmem:[#allocation5] sm:$0xff] %v23
    %26 = vst [vmem:[#allocation5 + $0x8] sm:$0xff] %v24
    // Predicated region
    $region10: #{tpu_custom_call.1} parent=1 // pred_check
      _
    $region11: #{tpu_custom_call.1} parent=1 // pred_check_branch
      %28 = sbr.rel (0) target = $region13
    $region12: #{tpu_custom_call.1} parent=1 // pred_region
      %s30 = ssub.s32 256, 256
      %31 = vsyncadd [#allocation4], %s30
      %s33 = sshll.u32 [#allocation5], 4
      %s34 = int_to_ptr.vmem [resolvable:$true] %s33
      %36 = dma.vmem_to_hbm [thread:$0]  %s34, 256, %s1, [#allocation4]
    $region13: #{tpu_custom_call.1} parent=1 // pred_fallthru
      _
    // Predicated region
    $region14: #{tpu_custom_call.1} parent=1 // pred_check
      _
    $region15: #{tpu_custom_call.1} parent=1 // pred_check_branch
      %38 = sbr.rel (0) target = $region17
    $region16: #{tpu_custom_call.1} parent=1 // pred_region
      %39 = dma.done [#allocation4], 256
    $region17: #{tpu_custom_call.1} parent=1 // pred_fallthru
      _
    %40 = vsyncpa [#allocation3], 1
    %41 = vsyncpa [#allocation4], 1

</llo_original>
